<compile_context>
chip_gen: v7x
topology: tpu7x:2x2x1
jax: 0.10.0
libtpu: 0.0.40
codegen_flags: <defaults>
</compile_context>

<pallas_src>
import functools

import jax
import jax.numpy as jnp
from jax import lax
from jax.experimental import pallas as pl
from jax.experimental.pallas import tpu as pltpu


def _triple(v):
    return (v, v, v) if isinstance(v, int) else tuple(v)


# ----------------------------------------------------------------------------
# Pallas kernel: direct 3-D conv (depth-tap loop) + bias + LeakyReLU, fused.
#
#   x_ref   : (sd, Dq*Ho*Wo, K)   bf16   staged input, one batch
#   w_ref   : (kd, K, Coutp)      bf16   per-depth-tap weight matrices (resident)
#   b_ref   : (1, Coutp)          f32    bias row (zero-padded)
#   o_ref   : (Do*Ho*Wo, Coutp)   f32    output voxels (channels-last, padded)
#   acc_ref : (Do*Ho*Wo, Coutp)   f32    VMEM accumulator scratch
#
# K = kh*kw*Cin: the in-plane taps are pre-folded into the contraction dim, so
# only the kd depth taps are looped here (kd matmuls per batch).
# ----------------------------------------------------------------------------
def _conv3d_taps_kernel(x_ref, w_ref, b_ref, o_ref, acc_ref, *,
                        kd, sd, rows_out, how, negative_slope):
    for dz in range(kd):                              # static loop -> unrolled
        phase = dz % sd                               # depth stride-phase plane
        row0 = (dz // sd) * how                       # static row offset
        lhs = x_ref[phase, pl.ds(row0, rows_out), :]  # (rows_out, K) bf16
        contrib = jnp.dot(lhs, w_ref[dz],
                          preferred_element_type=jnp.float32)   # MXU, f32 acc
        if dz == 0:
            acc_ref[...] = contrib
        else:
            acc_ref[...] += contrib
    res = acc_ref[...] + b_ref[...]                               # bias (f32)
    res = jnp.where(res >= 0, res, negative_slope * res)          # LeakyReLU
    o_ref[...] = res.astype(o_ref.dtype)


# ----------------------------------------------------------------------------
# JAX glue: channels-last padding + HW-tap folding + depth stride-phase split.
# staged[n, p, (dq,ho,wo), (dy,dx,ci)] = xpad[n, dq*sd+p, ho*sh+dy, wo*sw+dx, ci]
# ----------------------------------------------------------------------------
def _stage_input(xt, ksize, stride, padding, out_size, compute_dtype):
    N, D, H, W, Cin = xt.shape
    kd, kh, kw = ksize
    sd, sh, sw = stride
    pd, ph, pw = padding
    Do, Ho, Wo = out_size

    Dq = Do + (kd - 1) // sd            # phase-grid depth (includes depth halo)
    Dp = Dq * sd                        # padded depth actually staged
    Hp = (Ho - 1) * sh + kh             # padded H/W extents actually read
    Wp = (Wo - 1) * sw + kw

    xt = xt.astype(compute_dtype)
    xp = jnp.pad(xt, ((0, 0),
                      (pd, max(0, Dp - pd - D)),
                      (ph, max(0, Hp - ph - H)),
                      (pw, max(0, Wp - pw - W)),
                      (0, 0)))[:, :Dp, :Hp, :Wp, :]

    # Fold kh*kw in-plane taps into the lane dim, lane order (dy, dx, ci).
    taps = []
    for dy in range(kh):
        for dx in range(kw):
            taps.append(xp[:, :, dy:dy + Ho * sh:sh, dx:dx + Wo * sw:sw, :])
    t = jnp.stack(taps, axis=4)                       # (N, Dp, Ho, Wo, kh*kw, Cin)
    t = t.reshape(N, Dp, Ho, Wo, kh * kw * Cin)

    # Depth stride-phase decomposition: d = dq*sd + p
    t = t.reshape(N, Dq, sd, Ho, Wo, kh * kw * Cin)
    t = jnp.transpose(t, (0, 2, 1, 3, 4, 5))
    return t.reshape(N, sd, Dq * Ho * Wo, kh * kw * Cin)


# ----------------------------------------------------------------------------
# ConvLayer3DDown forward: Conv3d(bias=True) -> LeakyReLU   (norm=None, sn=False)
# ----------------------------------------------------------------------------
def conv_layer_3d_down(x, weight, bias, stride=1, padding=0,
                       negative_slope=0.01, compute_dtype=jnp.bfloat16,
                       channels_last_output=False):
    """x: (N, Cin, D, H, W); weight: (Cout, Cin, kd, kh, kw); bias: (Cout,)."""
    stride = _triple(stride)
    padding = _triple(padding)
    N, Cin, D, H, W = x.shape
    Cout, Cin_w, kd, kh, kw = weight.shape
    assert Cin_w == Cin
    sd, sh, sw = stride
    pd, ph, pw = padding

    Do = (D + 2 * pd - kd) // sd + 1
    Ho = (H + 2 * ph - kh) // sh + 1
    Wo = (W + 2 * pw - kw) // sw + 1
    how = Ho * Wo
    rows_out = Do * how
    Dq = Do + (kd - 1) // sd
    K = kh * kw * Cin
    Coutp = ((Cout + 127) // 128) * 128          # lane-dense output channels

    # --- glue: channels-last staging + weight/bias prep (bf16 operands) ------
    xt = jnp.transpose(x, (0, 2, 3, 4, 1))                       # NDHWC
    staged = _stage_input(xt, (kd, kh, kw), stride, padding,
                          (Do, Ho, Wo), compute_dtype)           # (N, sd, Dq*how, K)

    # weight[co, ci, dz, dy, dx] -> wmat[dz, (dy, dx, ci), co] matches lane order
    wmat = jnp.transpose(weight, (2, 3, 4, 1, 0)).reshape(kd, K, Cout)
    wmat = jnp.pad(wmat, ((0, 0), (0, 0), (0, Coutp - Cout))).astype(compute_dtype)
    brow = jnp.pad(bias, (0, Coutp - Cout)).reshape(1, Coutp).astype(jnp.float32)

    kernel = functools.partial(_conv3d_taps_kernel, kd=kd, sd=sd,
                               rows_out=rows_out, how=how,
                               negative_slope=negative_slope)

    out = pl.pallas_call(
        kernel,
        out_shape=jax.ShapeDtypeStruct((N, rows_out, Coutp), jnp.float32),
        grid_spec=pltpu.PrefetchScalarGridSpec(
            num_scalar_prefetch=0,
            grid=(N,),
            in_specs=[
                # one batch's staged slab; full-extent trailing dims -> unmasked DMA
                pl.BlockSpec((None, sd, Dq * how, K), lambda n: (n, 0, 0, 0)),
                # VMEM-resident weight / bias (constant index map -> no re-fetch)
                pl.BlockSpec((kd, K, Coutp), lambda n: (0, 0, 0)),
                pl.BlockSpec((1, Coutp), lambda n: (0, 0)),
            ],
            out_specs=pl.BlockSpec((None, rows_out, Coutp), lambda n: (n, 0, 0)),
            scratch_shapes=[pltpu.VMEM((rows_out, Coutp), jnp.float32)],
        ),
        compiler_params=pltpu.CompilerParams(
            dimension_semantics=("parallel",),     # batches shard across v7x's 2 TCs
            vmem_limit_bytes=32 * 1024 * 1024,     # explicit budget, safe v5e..v7x
        ),
    )(staged, wmat, brow)

    out = out[:, :, :Cout].reshape(N, Do, Ho, Wo, Cout)          # drop channel pad
    if channels_last_output:
        return out                                               # NDHWC (no transpose)
    return jnp.transpose(out, (0, 4, 1, 2, 3))                   # back to NCDHW

# TODO(synk): norm='BN'/'IN' and sn=True (SpectralNorm) branches of ConvLayer3DDown
#             are not exercised by the default config and are not implemented.
# TODO(synk): for very large volumes where one batch's staged slab exceeds the VMEM
#             budget, the row dim additionally needs tiling with a depth halo
#             (manual DMA via memory_space=pl.ANY); not needed at these sizes.


if __name__ == "__main__":
    key = jax.random.PRNGKey(0)
    k_x, k_w, k_b = jax.random.split(key, 3)

    # Small shapes: batch=2, in_channels=4, out_channels=8, spatial=8^3,
    # kernel_size=3, stride=2, padding=1 (the "Down" layer downsamples).
    N, Cin, D, H, W = 2, 4, 8, 8, 8
    Cout, Ksz = 8, 3
    stride = (2, 2, 2)
    padding = (1, 1, 1)

    x = jax.random.normal(k_x, (N, Cin, D, H, W), dtype=jnp.float32)
    weight = jax.random.normal(k_w, (Cout, Cin, Ksz, Ksz, Ksz), dtype=jnp.float32) * 0.1
    bias = jax.random.normal(k_b, (Cout,), dtype=jnp.float32) * 0.1

    fwd = jax.jit(functools.partial(conv_layer_3d_down,
                                    stride=stride, padding=padding))
    out = jax.block_until_ready(fwd(x, weight, bias))

    # Reference: XLA conv in f32 (same semantics as nn.Conv3d + LeakyReLU).
    ref = lax.conv_general_dilated(
        x, weight, window_strides=stride,
        padding=[(p, p) for p in padding],
        dimension_numbers=("NCDHW", "OIDHW", "NCDHW"))
    ref = ref + bias.reshape(1, Cout, 1, 1, 1)
    ref = jnp.where(ref >= 0, ref, 0.01 * ref)

    assert out.shape == ref.shape == (N, Cout, 4, 4, 4)
    # bf16 operands (f32 accumulation) vs f32 reference -> loosened tolerance.
    max_err = float(jnp.max(jnp.abs(out - ref)))
    assert max_err < 5e-2, max_err
    print("KERNEL_OK")
</pallas_src>

<mosaic_0001>
module attributes {stable_mosaic.version = 11 : i64} {
  func.func @_conv3d_taps_kernel(%arg0: i32, %arg1: memref<1x2x80x36xbf16, #tpu.memory_space<vmem>>, %arg2: memref<3x36x128xbf16, #tpu.memory_space<vmem>>, %arg3: memref<1x128xf32, #tpu.memory_space<vmem>>, %arg4: memref<1x64x128xf32, #tpu.memory_space<vmem>>, %arg5: memref<64x128xf32, #tpu.memory_space<vmem>>) attributes {dimension_semantics = [#tpu.dimension_semantics<parallel>], iteration_bounds = array<i64: 2>, scalar_prefetch = 0 : i64, scratch_operands = 1 : i64, tpu.core_type = #tpu.core_type<tc>, window_params = [{transform_indices = @transform_0, window_bounds = array<i64: 1, 2, 80, 36>}, {pipeline_mode = #tpu.pipeline_mode<synchronous>, transform_indices = @transform_1, window_bounds = array<i64: 3, 36, 128>}, {pipeline_mode = #tpu.pipeline_mode<synchronous>, transform_indices = @transform_2, window_bounds = array<i64: 1, 128>}, {transform_indices = @transform_3, window_bounds = array<i64: 1, 64, 128>}]} {
    %c0 = arith.constant 0 : index
    %c0_0 = arith.constant 0 : index
    %c0_1 = arith.constant 0 : index
    %c0_2 = arith.constant 0 : index
    %0 = vector.load %arg1[%c0, %c0_0, %c0_1, %c0_2] : memref<1x2x80x36xbf16, #tpu.memory_space<vmem>>, vector<1x1x64x36xbf16>
    %1 = vector.shape_cast %0 : vector<1x1x64x36xbf16> to vector<64x36xbf16>
    %c0_3 = arith.constant 0 : index
    %c0_4 = arith.constant 0 : index
    %c0_5 = arith.constant 0 : index
    %2 = vector.load %arg2[%c0_3, %c0_4, %c0_5] : memref<3x36x128xbf16, #tpu.memory_space<vmem>>, vector<1x36x128xbf16>
    %3 = vector.shape_cast %2 : vector<1x36x128xbf16> to vector<36x128xbf16>
    %cst = arith.constant dense<0.000000e+00> : vector<64x128xf32>
    %4 = tpu.matmul %1, %3, %cst {dimension_numbers = #tpu.dot_dimension_numbers<[1], [0], [0], [1], [0, 0, 1, 1], [], []>} : vector<64x36xbf16>, vector<36x128xbf16>, vector<64x128xf32> -> vector<64x128xf32>
    %c0_6 = arith.constant 0 : index
    %c0_7 = arith.constant 0 : index
    %5 = vector.load %arg5[%c0_6, %c0_7] : memref<64x128xf32, #tpu.memory_space<vmem>>, vector<64x128xf32>
    tpu.vector_store %arg5[%c0_6, %c0_7], %4 {strides = array<i32>} : memref<64x128xf32, #tpu.memory_space<vmem>>, vector<64x128xf32>,
    %c0_8 = arith.constant 0 : index
    %c1 = arith.constant 1 : index
    %c0_9 = arith.constant 0 : index
    %c0_10 = arith.constant 0 : index
    %6 = vector.load %arg1[%c0_8, %c1, %c0_9, %c0_10] : memref<1x2x80x36xbf16, #tpu.memory_space<vmem>>, vector<1x1x64x36xbf16>
    %7 = vector.shape_cast %6 : vector<1x1x64x36xbf16> to vector<64x36xbf16>
    %c1_11 = arith.constant 1 : index
    %c0_12 = arith.constant 0 : index
    %c0_13 = arith.constant 0 : index
    %8 = vector.load %arg2[%c1_11, %c0_12, %c0_13] : memref<3x36x128xbf16, #tpu.memory_space<vmem>>, vector<1x36x128xbf16>
    %9 = vector.shape_cast %8 : vector<1x36x128xbf16> to vector<36x128xbf16>
    %cst_14 = arith.constant dense<0.000000e+00> : vector<64x128xf32>
    %10 = tpu.matmul %7, %9, %cst_14 {dimension_numbers = #tpu.dot_dimension_numbers<[1], [0], [0], [1], [0, 0, 1, 1], [], []>} : vector<64x36xbf16>, vector<36x128xbf16>, vector<64x128xf32> -> vector<64x128xf32>
    %c0_15 = arith.constant 0 : index
    %c0_16 = arith.constant 0 : index
    %11 = vector.load %arg5[%c0_15, %c0_16] : memref<64x128xf32, #tpu.memory_space<vmem>>, vector<64x128xf32>
    %12 = arith.addf %11, %10 : vector<64x128xf32>
    %c0_17 = arith.constant 0 : index
    %c0_18 = arith.constant 0 : index
    %13 = vector.load %arg5[%c0_17, %c0_18] : memref<64x128xf32, #tpu.memory_space<vmem>>, vector<64x128xf32>
    tpu.vector_store %arg5[%c0_17, %c0_18], %12 {strides = array<i32>} : memref<64x128xf32, #tpu.memory_space<vmem>>, vector<64x128xf32>,
    %c0_19 = arith.constant 0 : index
    %c0_20 = arith.constant 0 : index
    %c16 = arith.constant 16 : index
    %c0_21 = arith.constant 0 : index
    %14 = vector.load %arg1[%c0_19, %c0_20, %c16, %c0_21] : memref<1x2x80x36xbf16, #tpu.memory_space<vmem>>, vector<1x1x64x36xbf16>
    %15 = vector.shape_cast %14 : vector<1x1x64x36xbf16> to vector<64x36xbf16>
    %c2 = arith.constant 2 : index
    %c0_22 = arith.constant 0 : index
    %c0_23 = arith.constant 0 : index
    %16 = vector.load %arg2[%c2, %c0_22, %c0_23] : memref<3x36x128xbf16, #tpu.memory_space<vmem>>, vector<1x36x128xbf16>
    %17 = vector.shape_cast %16 : vector<1x36x128xbf16> to vector<36x128xbf16>
    %cst_24 = arith.constant dense<0.000000e+00> : vector<64x128xf32>
    %18 = tpu.matmul %15, %17, %cst_24 {dimension_numbers = #tpu.dot_dimension_numbers<[1], [0], [0], [1], [0, 0, 1, 1], [], []>} : vector<64x36xbf16>, vector<36x128xbf16>, vector<64x128xf32> -> vector<64x128xf32>
    %c0_25 = arith.constant 0 : index
    %c0_26 = arith.constant 0 : index
    %19 = vector.load %arg5[%c0_25, %c0_26] : memref<64x128xf32, #tpu.memory_space<vmem>>, vector<64x128xf32>
    %20 = arith.addf %19, %18 : vector<64x128xf32>
    %c0_27 = arith.constant 0 : index
    %c0_28 = arith.constant 0 : index
    %21 = vector.load %arg5[%c0_27, %c0_28] : memref<64x128xf32, #tpu.memory_space<vmem>>, vector<64x128xf32>
    tpu.vector_store %arg5[%c0_27, %c0_28], %20 {strides = array<i32>} : memref<64x128xf32, #tpu.memory_space<vmem>>, vector<64x128xf32>,
    %c0_29 = arith.constant 0 : index
    %c0_30 = arith.constant 0 : index
    %22 = vector.load %arg5[%c0_29, %c0_30] : memref<64x128xf32, #tpu.memory_space<vmem>>, vector<64x128xf32>
    %c0_31 = arith.constant 0 : index
    %c0_32 = arith.constant 0 : index
    %23 = vector.load %arg3[%c0_31, %c0_32] : memref<1x128xf32, #tpu.memory_space<vmem>>, vector<1x128xf32>
    %24 = vector.broadcast %23 : vector<1x128xf32> to vector<64x128xf32>
    %25 = arith.addf %22, %24 : vector<64x128xf32>
    %cst_33 = arith.constant 0.000000e+00 : f32
    %26 = vector.broadcast %cst_33 : f32 to vector<64x128xf32>
    %27 = arith.cmpf oge, %25, %26 : vector<64x128xf32>
    %cst_34 = arith.constant 0.00999999977 : f32
    %28 = vector.broadcast %cst_34 : f32 to vector<64x128xf32>
    %29 = arith.mulf %28, %25 : vector<64x128xf32>
    %30 = arith.select %27, %25, %29 : vector<64x128xi1>, vector<64x128xf32>
    %c0_35 = arith.constant 0 : index
    %c0_36 = arith.constant 0 : index
    %c0_37 = arith.constant 0 : index
    %31 = vector.load %arg4[%c0_35, %c0_36, %c0_37] : memref<1x64x128xf32, #tpu.memory_space<vmem>>, vector<1x64x128xf32>
    %32 = vector.shape_cast %31 : vector<1x64x128xf32> to vector<64x128xf32>
    %33 = vector.shape_cast %30 : vector<64x128xf32> to vector<1x64x128xf32>
    tpu.vector_store %arg4[%c0_35, %c0_36, %c0_37], %33 {strides = array<i32>} : memref<1x64x128xf32, #tpu.memory_space<vmem>>, vector<1x64x128xf32>,
    return
  }
  func.func @transform_0(%arg0: i32) -> (i32, i32, i32, i32) {
    %c0_i32 = arith.constant 0 : i32
    %c0_i32_0 = arith.constant 0 : i32
    %c0_i32_1 = arith.constant 0 : i32
    %c0_i32_2 = arith.constant 0 : i32
    return %arg0, %c0_i32, %c0_i32_0, %c0_i32_1 : i32, i32, i32, i32
  }
  func.func @transform_1(%arg0: i32) -> (i32, i32, i32) {
    %c0_i32 = arith.constant 0 : i32
    %c0_i32_0 = arith.constant 0 : i32
    %c0_i32_1 = arith.constant 0 : i32
    %c0_i32_2 = arith.constant 0 : i32
    return %c0_i32, %c0_i32_0, %c0_i32_1 : i32, i32, i32
  }
  func.func @transform_2(%arg0: i32) -> (i32, i32) {
    %c0_i32 = arith.constant 0 : i32
    %c0_i32_0 = arith.constant 0 : i32
    %c0_i32_1 = arith.constant 0 : i32
    return %c0_i32, %c0_i32_0 : i32, i32
  }
  func.func @transform_3(%arg0: i32) -> (i32, i32, i32) {
    %c0_i32 = arith.constant 0 : i32
    %c0_i32_0 = arith.constant 0 : i32
    %c0_i32_1 = arith.constant 0 : i32
    return %arg0, %c0_i32, %c0_i32_0 : i32, i32, i32
  }
}

</mosaic_0001>

<llo_original>
// kernel: conv_layer_3d_down.1
$region0: #{conv_layer_3d_down.1}
  #allocation0 [shape = 'u32[]', space=smem, size = 0x4, offset = 0x4, fixed_abs, tag = 'smem constant byte address 0x4 - core index']
  #allocation1 [shape = 'u32[144,128]{1,0:T(1,128)}', space=vmem, size = 0x12000, scoped, tag = 'internal scratch']
  #allocation2 [shape = 'f32[64,128]{1,0:T(8,128)}', space=vmem, size = 0x8000, scoped, tag = 'scratch operand']
  %s0 = inlined_call_operand.vmem [shape: bf16[2,2,80,36], index: 0, kind: input, shape index: {}]
  %s1 = inlined_call_operand.vmem [shape: bf16[3,36,128], index: 1, kind: input, shape index: {}]
  %s2 = inlined_call_operand.vmem [shape: f32[1,128], index: 2, kind: input, shape index: {}]
  %s3 = inlined_call_operand.hbm [shape: f32[2,64,128], index: 3, kind: output, shape index: {}]
  %s4 = sld [smem:[#allocation0]]
  $region45: #{conv_layer_3d_down.1} parent=0
    _
  %s6 = ssub.s32 1, %s4
  %s7 = scalar_select 0, %s6, %s4
  $region1: #{conv_layer_3d_down.1} parent=0
    #allocation3 [shape = 'u8[65536]{0}', space=vmem, size = 0x10000, scoped, tag = 'output window, operand 0']
    #allocation4 [shape = 's32[2]{0}', space=sflag, size = 0x8, scoped, tag = 'scoped memory for conv_layer_3d_down.1']
    %8 = vsyncpa [#allocation4], 0
    %s9 = scalar_lea.sflag [#allocation4], 1
    %10 = vsyncpa %s9, 0
    loop: start=0, step=1, limit=4
    $region2: #{conv_layer_3d_down.1} parent=1 // loop_pre_header
      _
    $region3: #{conv_layer_3d_down.1} parent=1 // loop_header
      %s12 = sphi 0, %s16
      %p13 = scmp.ge.s32.totalorder %s12, 4
      %s22 = sphi 0, %s24
      %s25 = sphi 0, %s22
      %s26 = sphi 0, %s25
      %s42 = sphi 0, %s26
      %s46 = sphi 0, %s46
      %s48 = sphi 0, %s46
      %s49 = sphi 0, %s48
      %s63 = sphi 0, %s49
      %s67 = sphi 0, %s67
      %s69 = sphi 0, %s67
      %s70 = sphi 0, %s69
      %s84 = sphi 0, %s70
      %s90 = sphi 0, %s92
      %s93 = sphi 0, %s90
      %s94 = sphi 0, %s93
      %s110 = sphi 0, %s94
    $region4: #{conv_layer_3d_down.1} parent=1 // loop_header_branch
      %15 = sbr.rel (%p13) target = $region8
    $region5: #{conv_layer_3d_down.1} parent=1 // loop_body
      %s17 = ssub.s32 %s12, 1
      %s18 = ssub.s32 %s12, 2
      %s19 = sadd.s32 %s12, 1
      %s20 = ssub.s32 %s12, %s19
      %p21 = scmp.eq.s32.totalorder %s20, 0
      %s23 = sadd.s32 %s22, 1
      %s24 = scalar_select %p21, %s22, %s23
      %p27 = pneg %p21
      %p28 = scmp.eq.s32.totalorder %s12, 1
      %p29 = por %p27, %p28
      %p30 = scmp.ne.s32.totalorder %s22, %s25
      %p31 = scmp.eq.s32.totalorder %s12, 0
      %p32 = por %p30, %p31
      %p33 = scmp.ne.s32.totalorder %s22, %s25
      %p34 = scmp.eq.s32.totalorder %s17, 1
      %p35 = por %p33, %p34
      %p36 = scmp.ne.s32.totalorder %s25, %s26
      %p37 = scmp.eq.s32.totalorder %s17, 0
      %p38 = por %p36, %p37
      %p39 = scmp.ne.s32.totalorder %s25, %s26
      %p40 = scmp.eq.s32.totalorder %s18, 1
      %p41 = por %p39, %p40
      %p43 = scmp.ne.s32.totalorder %s26, %s42
      %p44 = scmp.eq.s32.totalorder %s18, 0
      %p45 = por %p43, %p44
      %s47 = sadd.s32 %s46, 1
      %p50 = scmp.eq.s32.totalorder %s12, 1
      %p51 = scmp.ne.s32.totalorder %s46, %s48
      %p52 = scmp.eq.s32.totalorder %s12, 0
      %p53 = por %p51, %p52
      %p54 = scmp.ne.s32.totalorder %s46, %s48
      %p55 = scmp.eq.s32.totalorder %s17, 1
      %p56 = por %p54, %p55
      %p57 = scmp.ne.s32.totalorder %s48, %s49
      %p58 = scmp.eq.s32.totalorder %s17, 0
      %p59 = por %p57, %p58
      %p60 = scmp.ne.s32.totalorder %s48, %s49
      %p61 = scmp.eq.s32.totalorder %s18, 1
      %p62 = por %p60, %p61
      %p64 = scmp.ne.s32.totalorder %s49, %s63
      %p65 = scmp.eq.s32.totalorder %s18, 0
      %p66 = por %p64, %p65
      %s68 = sadd.s32 %s67, 1
      %p71 = scmp.eq.s32.totalorder %s12, 1
      %p72 = scmp.ne.s32.totalorder %s67, %s69
      %p73 = scmp.eq.s32.totalorder %s12, 0
      %p74 = por %p72, %p73
      %p75 = scmp.ne.s32.totalorder %s67, %s69
      %p76 = scmp.eq.s32.totalorder %s17, 1
      %p77 = por %p75, %p76
      %p78 = scmp.ne.s32.totalorder %s69, %s70
      %p79 = scmp.eq.s32.totalorder %s17, 0
      %p80 = por %p78, %p79
      %p81 = scmp.ne.s32.totalorder %s69, %s70
      %p82 = scmp.eq.s32.totalorder %s18, 1
      %p83 = por %p81, %p82
      %p85 = scmp.ne.s32.totalorder %s70, %s84
      %p86 = scmp.eq.s32.totalorder %s18, 0
      %p87 = por %p85, %p86
      %s88 = ssub.s32 %s12, %s19
      %p89 = scmp.eq.s32.totalorder %s88, 0
      %s91 = sadd.s32 %s90, 1
      %s92 = scalar_select %p89, %s90, %s91
      %p95 = pneg %p89
      %p96 = scmp.eq.s32.totalorder %s12, 1
      %p97 = por %p95, %p96
      %p98 = scmp.ne.s32.totalorder %s90, %s93
      %p99 = scmp.eq.s32.totalorder %s12, 0
      %p100 = por %p98, %p99
      %p101 = scmp.ne.s32.totalorder %s90, %s93
      %p102 = scmp.eq.s32.totalorder %s17, 1
      %p103 = por %p101, %p102
      %p104 = scmp.ne.s32.totalorder %s93, %s94
      %p105 = scmp.eq.s32.totalorder %s17, 0
      %p106 = por %p104, %p105
      %p107 = scmp.ne.s32.totalorder %s93, %s94
      %p108 = scmp.eq.s32.totalorder %s18, 1
      %p109 = por %p107, %p108
      %p111 = scmp.ne.s32.totalorder %s94, %s110
      %p112 = scmp.eq.s32.totalorder %s18, 0
      %p113 = por %p111, %p112
      %p114 = scmp.le.s32.totalorder 1, %s12
      %p115 = scmp.lt.s32.totalorder %s12, 3
      %p116 = pnand %p114, %p115
      %p117 = pneg %p116
      // Predicated region
      $region9: #{conv_layer_3d_down.1} parent=5 // pred_check
        _
      $region10: #{conv_layer_3d_down.1} parent=5 // pred_check_branch
        %119 = sbr.rel (%p116) target = $region12
      $region11: #{conv_layer_3d_down.1} parent=5 // pred_region
        %s120 = ssub.s32 %s12, 1
        // Predicated region
        $region13: #{conv_layer_3d_down.1} parent=11 // pred_check
          %p121 = pneg %p59
        $region14: #{conv_layer_3d_down.1} parent=11 // pred_check_branch
          %123 = sbr.rel (%p121) target = $region16
        $region15: #{conv_layer_3d_down.1} parent=11 // pred_region
          _
        $region16: #{conv_layer_3d_down.1} parent=11 // pred_fallthru
          _
        // Predicated region
        $region17: #{conv_layer_3d_down.1} parent=11 // pred_check
          %p124 = pneg %p80
        $region18: #{conv_layer_3d_down.1} parent=11 // pred_check_branch
          %126 = sbr.rel (%p124) target = $region20
        $region19: #{conv_layer_3d_down.1} parent=11 // pred_region
          _
        $region20: #{conv_layer_3d_down.1} parent=11 // pred_fallthru
          _
      $region12: #{conv_layer_3d_down.1} parent=5 // pred_fallthru
        _
      %p127 = scmp.lt.s32.totalorder %s12, 2
      // Predicated region
      $region21: #{conv_layer_3d_down.1} parent=5 // pred_check
        %p128 = pneg %p127
      $region22: #{conv_layer_3d_down.1} parent=5 // pred_check_branch
        %130 = sbr.rel (%p128) target = $region24
      $region23: #{conv_layer_3d_down.1} parent=5 // pred_region
        // Predicated region
        $region25: #{conv_layer_3d_down.1} parent=23 // pred_check
          %p131 = pneg %p32
        $region26: #{conv_layer_3d_down.1} parent=23 // pred_check_branch
          %133 = sbr.rel (%p131) target = $region28
        $region27: #{conv_layer_3d_down.1} parent=23 // pred_region
          %p134 = scmp.lt.s32.totalorder %s12, 1
          %s135 = scalar_select %p134, %s12, 1
          %s136 = smul.addr %s135, 20
          %s137 = smul.addr %s136, 4
          %s138 = scalar_lea.vmem %s0, %s137
        $region28: #{conv_layer_3d_down.1} parent=23 // pred_fallthru
          _
      $region24: #{conv_layer_3d_down.1} parent=5 // pred_fallthru
        _
      %p139 = scmp.le.s32.totalorder 1, %s12
      %p140 = scmp.lt.s32.totalorder %s12, 3
      %p141 = pnand %p139, %p140
      %p142 = pneg %p141
      // Predicated region
      $region29: #{conv_layer_3d_down.1} parent=5 // pred_check
        _
      $region30: #{conv_layer_3d_down.1} parent=5 // pred_check_branch
        %144 = sbr.rel (%p141) target = $region32
      $region31: #{conv_layer_3d_down.1} parent=5 // pred_region
        %s145 = ssub.s32 %s12, 1
        %p146 = scmp.lt.s32.totalorder %s17, 1
        %s147 = scalar_select %p146, %s17, 1
        %s148 = smul.addr %s147, 20
        %s149 = smul.addr %s148, 4
        %s150 = scalar_lea.vmem %s0, %s149
        %p151 = pneg %p38
        %p152 = pneg %p35
        %p153 = pneg %p59
        %p154 = pneg %p56
        %p155 = pneg %p80
        %p156 = pneg %p77
        %p157 = pneg %p106
        %p158 = pneg %p103
        %s159 = sand.u32 %s93, 1
        %s160 = scalar_lea.sflag [#allocation4], %s159
        %s161 = sand.u32 %s93, 1
        %s162 = smul.addr %s161, 64
        %s163 = scalar_lea.vmem [#allocation3], %s162
        %p164 = scmp.lt.s32.totalorder %s17, 1
        %s165 = scalar_select %p164, %s17, 1
        %s166 = smul.addr %s165, 20
        %s167 = smul.addr %s166, 4
        %s168 = scalar_lea.vmem %s0, %s167
        %v170 = vld [vmem:[%s168] sm:$0xf]
        %v171 = vld [vmem:[%s168 + $0x4] sm:$0xf]
        %v172 = vld [vmem:[%s168 + $0x8] sm:$0xf]
        %v173 = vld [vmem:[%s168 + $0xc] sm:$0xf]
        %v174 = vld [vmem:[%s168 + $0x10] sm:$0xf]
        %v175 = vld [vmem:[%s168 + $0x14] sm:$0xf]
        %v176 = vld [vmem:[%s168 + $0x18] sm:$0xf]
        %v177 = vld [vmem:[%s168 + $0x1c] sm:$0xf]
        %v178 = vld [vmem:[%s1] sm:$0xf]
        %v179 = vld [vmem:[%s1 + $0x4] sm:$0xf]
        %v180 = vld [vmem:[%s1 + $0x8] sm:$0xf]
        %v181 = vld [vmem:[%s1 + $0xc] sm:$0xf]
        %v182 = vld [vmem:[%s1 + $0x10] sm:$0x3]
        %v191 = vunpack.c.l.b16 %v170
        %v192 = vunpack.c.l.b16 %v171
        %v193 = vunpack.c.l.b16 %v172
        %v194 = vunpack.c.l.b16 %v173
        %v195 = vunpack.c.l.b16 %v174
        %v196 = vunpack.c.l.b16 %v175
        %v197 = vunpack.c.l.b16 %v176
        %v198 = vunpack.c.l.b16 %v177
        %v199 = vpack.c.b16 %v192, %v191
        %v200 = vpack.c.b16 %v194, %v193
        %v201 = vpack.c.b16 %v196, %v195
        %v202 = vpack.c.b16 %v198, %v197
        %v208 = vunpack.c.l.b16 %v178
        %v209 = vunpack.c.l.b16 %v179
        %v210 = vunpack.c.l.b16 %v180
        %v211 = vunpack.c.l.b16 %v181
        %v212 = vunpack.c.l.b16 %v182
        %v213 = vpack.c.b16 %v209, %v208
        %v214 = vpack.c.b16 %v211, %v210
        %v215 = vpack.c.b16 %v212, %v212
        %vm218 = vcmask 293888
        %v220 = vsel %vm218, %v199, 0
        %v223 = vsel %vm218, %v200, 0
        %v226 = vsel %vm218, %v201, 0
        %v229 = vsel %vm218, %v202, 0
        %vm231 = vcmask 1041408
        %v233 = vsel %vm231, %v215, 0
        %235 = vmatprep.subr.bf16.mxu0 0
        %236 = vmatpush1.bf16.msra.mxu0 %v213
        %237 = vmatprep.subr.bf16.mxu0 0
        %238 = vmatpush1.bf16.msra.mxu0 %v214
        %239 = vmatprep.subr.bf16.mxu0 0
        %240 = vmatpush1.bf16.msra.mxu0 %v233
        %241 = vmatprep.subr.bf16.mxu0 0
        %242 = vmatpush1.bf16.msra.mxu0 0
        %243 = vmatprep.subr.bf16.mxu0 0
        %244 = vmatpush1.bf16.msra.mxu0 0
        %245 = vmatprep.subr.bf16.mxu0 0
        %246 = vmatpush1.bf16.msra.mxu0 0
        %247 = vmatprep.subr.bf16.mxu0 0
        %248 = vmatpush1.bf16.msra.mxu0 0
        %249 = vmatprep.subr.bf16.mxu0 0
        %250 = vmatpush1.bf16.msra.mxu0 0
        %251 = vmatprep.subr.bf16.mxu0 0
        %252 = vmatpush1.bf16.msra.mxu0 0
        %253 = vmatprep.subr.bf16.mxu0 0
        %254 = vmatpush1.bf16.msra.mxu0 0
        %255 = vmatprep.subr.bf16.mxu0 0
        %256 = vmatpush1.bf16.msra.mxu0 0
        %257 = vmatprep.subr.bf16.mxu0 0
        %258 = vmatpush1.bf16.msra.mxu0 0
        %259 = vmatprep.subr.bf16.mxu0 0
        %260 = vmatpush1.bf16.msra.mxu0 0
        %261 = vmatprep.subr.bf16.mxu0 0
        %262 = vmatpush1.bf16.msra.mxu0 0
        %263 = vmatprep.subr.bf16.mxu0 0
        %264 = vmatpush1.bf16.msra.mxu0 0
        %265 = vmatprep.subr.bf16.mxu0 0
        %266 = vmatpush1.bf16.msra.mxu0 0
        %267 = vmatprep.mubr.bf16.mxu0 0
        %268 = vmatmul.mubr.bf16.gmra.mrb[0].mxu0 %v220
        %v269 = vpop.f32.mrb[0].mxu0
        %v270 = vadd.f32 0.0, %v269
        %v271 = vpop.f32.mrb[0].mxu0
        %v272 = vpop.f32.mrb[0].mxu0
        %v273 = vadd.f32 0.0, %v272
        %v274 = vpop.f32.mrb[0].mxu0
        %275 = vmatprep.mubr.bf16.mxu0 0
        %276 = vmatmul.mubr.bf16.gmra.mrb[0].mxu0 %v223
        %v277 = vpop.f32.mrb[0].mxu0
        %v278 = vadd.f32 0.0, %v277
        %v279 = vpop.f32.mrb[0].mxu0
        %v280 = vpop.f32.mrb[0].mxu0
        %v281 = vadd.f32 0.0, %v280
        %v282 = vpop.f32.mrb[0].mxu0
        %283 = vmatprep.mubr.bf16.mxu0 0
        %284 = vmatmul.mubr.bf16.gmra.mrb[0].mxu0 %v226
        %v285 = vpop.f32.mrb[0].mxu0
        %v286 = vadd.f32 0.0, %v285
        %v287 = vpop.f32.mrb[0].mxu0
        %v288 = vpop.f32.mrb[0].mxu0
        %v289 = vadd.f32 0.0, %v288
        %v290 = vpop.f32.mrb[0].mxu0
        %291 = vmatprep.mubr.bf16.mxu0 0
        %292 = vmatmul.mubr.bf16.gmra.mrb[0].mxu0 %v229
        %v293 = vpop.f32.mrb[0].mxu0
        %v294 = vadd.f32 0.0, %v293
        %v295 = vpop.f32.mrb[0].mxu0
        %v296 = vpop.f32.mrb[0].mxu0
        %v297 = vadd.f32 0.0, %v296
        %v298 = vpop.f32.mrb[0].mxu0
        %299 = vdwg.mxu0
        %300 = vst [vmem:[#allocation2] sm:$0xff] %v270
        %301 = vst [vmem:[#allocation2 + $0x8] sm:$0xff] %v273
        %302 = vst [vmem:[#allocation2 + $0x10] sm:$0xff] %v278
        %303 = vst [vmem:[#allocation2 + $0x18] sm:$0xff] %v281
        %304 = vst [vmem:[#allocation2 + $0x20] sm:$0xff] %v286
        %305 = vst [vmem:[#allocation2 + $0x28] sm:$0xff] %v289
        %306 = vst [vmem:[#allocation2 + $0x30] sm:$0xff] %v294
        %307 = vst [vmem:[#allocation2 + $0x38] sm:$0xff] %v297
        %s308 = scalar_lea.vmem %s168, 40
        %v309 = vld [vmem:[%s308] sm:$0xf]
        %v310 = vld [vmem:[%s308 + $0x4] sm:$0xf]
        %v311 = vld [vmem:[%s308 + $0x8] sm:$0xf]
        %v312 = vld [vmem:[%s308 + $0xc] sm:$0xf]
        %v313 = vld [vmem:[%s308 + $0x10] sm:$0xf]
        %v314 = vld [vmem:[%s308 + $0x14] sm:$0xf]
        %v315 = vld [vmem:[%s308 + $0x18] sm:$0xf]
        %v316 = vld [vmem:[%s308 + $0x1c] sm:$0xf]
        %s317 = scalar_lea.vmem %s1, 20
        %v318 = vld [vmem:[%s317] sm:$0xf]
        %v319 = vld [vmem:[%s317 + $0x4] sm:$0xf]
        %v320 = vld [vmem:[%s317 + $0x8] sm:$0xf]
        %v321 = vld [vmem:[%s317 + $0xc] sm:$0xf]
        %v322 = vld [vmem:[%s317 + $0x10] sm:$0x3]
        %v331 = vunpack.c.l.b16 %v309
        %v332 = vunpack.c.l.b16 %v310
        %v333 = vunpack.c.l.b16 %v311
        %v334 = vunpack.c.l.b16 %v312
        %v335 = vunpack.c.l.b16 %v313
        %v336 = vunpack.c.l.b16 %v314
        %v337 = vunpack.c.l.b16 %v315
        %v338 = vunpack.c.l.b16 %v316
        %v339 = vpack.c.b16 %v332, %v331
        %v340 = vpack.c.b16 %v334, %v333
        %v341 = vpack.c.b16 %v336, %v335
        %v342 = vpack.c.b16 %v338, %v337
        %v348 = vunpack.c.l.b16 %v318
        %v349 = vunpack.c.l.b16 %v319
        %v350 = vunpack.c.l.b16 %v320
        %v351 = vunpack.c.l.b16 %v321
        %v352 = vunpack.c.l.b16 %v322
        %v353 = vpack.c.b16 %v349, %v348
        %v354 = vpack.c.b16 %v351, %v350
        %v355 = vpack.c.b16 %v352, %v352
        %v359 = vsel %vm218, %v339, 0
        %v362 = vsel %vm218, %v340, 0
        %v365 = vsel %vm218, %v341, 0
        %v368 = vsel %vm218, %v342, 0
        %v371 = vsel %vm231, %v355, 0
        %373 = vmatprep.subr.bf16.mxu0 0
        %374 = vmatpush1.bf16.msra.mxu0 %v353
        %375 = vmatprep.subr.bf16.mxu0 0
        %376 = vmatpush1.bf16.msra.mxu0 %v354
        %377 = vmatprep.subr.bf16.mxu0 0
        %378 = vmatpush1.bf16.msra.mxu0 %v371
        %379 = vmatprep.subr.bf16.mxu0 0
        %380 = vmatpush1.bf16.msra.mxu0 0
        %381 = vmatprep.subr.bf16.mxu0 0
        %382 = vmatpush1.bf16.msra.mxu0 0
        %383 = vmatprep.subr.bf16.mxu0 0
        %384 = vmatpush1.bf16.msra.mxu0 0
        %385 = vmatprep.subr.bf16.mxu0 0
        %386 = vmatpush1.bf16.msra.mxu0 0
        %387 = vmatprep.subr.bf16.mxu0 0
        %388 = vmatpush1.bf16.msra.mxu0 0
        %389 = vmatprep.subr.bf16.mxu0 0
        %390 = vmatpush1.bf16.msra.mxu0 0
        %391 = vmatprep.subr.bf16.mxu0 0
        %392 = vmatpush1.bf16.msra.mxu0 0
        %393 = vmatprep.subr.bf16.mxu0 0
        %394 = vmatpush1.bf16.msra.mxu0 0
        %395 = vmatprep.subr.bf16.mxu0 0
        %396 = vmatpush1.bf16.msra.mxu0 0
        %397 = vmatprep.subr.bf16.mxu0 0
        %398 = vmatpush1.bf16.msra.mxu0 0
        %399 = vmatprep.subr.bf16.mxu0 0
        %400 = vmatpush1.bf16.msra.mxu0 0
        %401 = vmatprep.subr.bf16.mxu0 0
        %402 = vmatpush1.bf16.msra.mxu0 0
        %403 = vmatprep.subr.bf16.mxu0 0
        %404 = vmatpush1.bf16.msra.mxu0 0
        %405 = vmatprep.mubr.bf16.mxu0 0
        %406 = vmatmul.mubr.bf16.gmra.mrb[0].mxu0 %v359
        %v407 = vpop.f32.mrb[0].mxu0
        %v408 = vadd.f32 0.0, %v407
        %v409 = vpop.f32.mrb[0].mxu0
        %v410 = vpop.f32.mrb[0].mxu0
        %v411 = vadd.f32 0.0, %v410
        %v412 = vpop.f32.mrb[0].mxu0
        %413 = vmatprep.mubr.bf16.mxu0 0
        %414 = vmatmul.mubr.bf16.gmra.mrb[0].mxu0 %v362
        %v415 = vpop.f32.mrb[0].mxu0
        %v416 = vadd.f32 0.0, %v415
        %v417 = vpop.f32.mrb[0].mxu0
        %v418 = vpop.f32.mrb[0].mxu0
        %v419 = vadd.f32 0.0, %v418
        %v420 = vpop.f32.mrb[0].mxu0
        %421 = vmatprep.mubr.bf16.mxu0 0
        %422 = vmatmul.mubr.bf16.gmra.mrb[0].mxu0 %v365
        %v423 = vpop.f32.mrb[0].mxu0
        %v424 = vadd.f32 0.0, %v423
        %v425 = vpop.f32.mrb[0].mxu0
        %v426 = vpop.f32.mrb[0].mxu0
        %v427 = vadd.f32 0.0, %v426
        %v428 = vpop.f32.mrb[0].mxu0
        %429 = vmatprep.mubr.bf16.mxu0 0
        %430 = vmatmul.mubr.bf16.gmra.mrb[0].mxu0 %v368
        %v431 = vpop.f32.mrb[0].mxu0
        %v432 = vadd.f32 0.0, %v431
        %v433 = vpop.f32.mrb[0].mxu0
        %v434 = vpop.f32.mrb[0].mxu0
        %v435 = vadd.f32 0.0, %v434
        %v436 = vpop.f32.mrb[0].mxu0
        %437 = vdwg.mxu0
        %v438 = vld [vmem:[#allocation2] sm:$0xff]
        %v439 = vld [vmem:[#allocation2 + $0x8] sm:$0xff]
        %v440 = vld [vmem:[#allocation2 + $0x10] sm:$0xff]
        %v441 = vld [vmem:[#allocation2 + $0x18] sm:$0xff]
        %v442 = vld [vmem:[#allocation2 + $0x20] sm:$0xff]
        %v443 = vld [vmem:[#allocation2 + $0x28] sm:$0xff]
        %v444 = vld [vmem:[#allocation2 + $0x30] sm:$0xff]
        %v445 = vld [vmem:[#allocation2 + $0x38] sm:$0xff]
        %v446 = vadd.f32 %v438, %v408
        %v447 = vadd.f32 %v439, %v411
        %v448 = vadd.f32 %v440, %v416
        %v449 = vadd.f32 %v441, %v419
        %v450 = vadd.f32 %v442, %v424
        %v451 = vadd.f32 %v443, %v427
        %v452 = vadd.f32 %v444, %v432
        %v453 = vadd.f32 %v445, %v435
        %454 = vst [vmem:[#allocation2] sm:$0xff] %v446
        %455 = vst [vmem:[#allocation2 + $0x8] sm:$0xff] %v447
        %456 = vst [vmem:[#allocation2 + $0x10] sm:$0xff] %v448
        %457 = vst [vmem:[#allocation2 + $0x18] sm:$0xff] %v449
        %458 = vst [vmem:[#allocation2 + $0x20] sm:$0xff] %v450
        %459 = vst [vmem:[#allocation2 + $0x28] sm:$0xff] %v451
        %460 = vst [vmem:[#allocation2 + $0x30] sm:$0xff] %v452
        %461 = vst [vmem:[#allocation2 + $0x38] sm:$0xff] %v453
        %v462 = vld [vmem:[%s168 + $0x8] sm:$0xf]
        %v463 = vld [vmem:[%s168 + $0xc] sm:$0xf]
        %v464 = vld [vmem:[%s168 + $0x10] sm:$0xf]
        %v465 = vld [vmem:[%s168 + $0x14] sm:$0xf]
        %v466 = vld [vmem:[%s168 + $0x18] sm:$0xf]
        %v467 = vld [vmem:[%s168 + $0x1c] sm:$0xf]
        %v468 = vld [vmem:[%s168 + $0x20] sm:$0xf]
        %v469 = vld [vmem:[%s168 + $0x24] sm:$0xf]
        %s470 = scalar_lea.vmem %s1, 40
        %v471 = vld [vmem:[%s470] sm:$0xf]
        %v472 = vld [vmem:[%s470 + $0x4] sm:$0xf]
        %v473 = vld [vmem:[%s470 + $0x8] sm:$0xf]
        %v474 = vld [vmem:[%s470 + $0xc] sm:$0xf]
        %v475 = vld [vmem:[%s470 + $0x10] sm:$0x3]
        %v484 = vunpack.c.l.b16 %v462
        %v485 = vunpack.c.l.b16 %v463
        %v486 = vunpack.c.l.b16 %v464
        %v487 = vunpack.c.l.b16 %v465
        %v488 = vunpack.c.l.b16 %v466
        %v489 = vunpack.c.l.b16 %v467
        %v490 = vunpack.c.l.b16 %v468
        %v491 = vunpack.c.l.b16 %v469
        %v492 = vpack.c.b16 %v485, %v484
        %v493 = vpack.c.b16 %v487, %v486
        %v494 = vpack.c.b16 %v489, %v488
        %v495 = vpack.c.b16 %v491, %v490
        %v501 = vunpack.c.l.b16 %v471
        %v502 = vunpack.c.l.b16 %v472
        %v503 = vunpack.c.l.b16 %v473
        %v504 = vunpack.c.l.b16 %v474
        %v505 = vunpack.c.l.b16 %v475
        %v506 = vpack.c.b16 %v502, %v501
        %v507 = vpack.c.b16 %v504, %v503
        %v508 = vpack.c.b16 %v505, %v505
        %v512 = vsel %vm218, %v492, 0
        %v515 = vsel %vm218, %v493, 0
        %v518 = vsel %vm218, %v494, 0
        %v521 = vsel %vm218, %v495, 0
        %v524 = vsel %vm231, %v508, 0
        %526 = vmatprep.subr.bf16.mxu0 0
        %527 = vmatpush1.bf16.msra.mxu0 %v506
        %528 = vmatprep.subr.bf16.mxu0 0
        %529 = vmatpush1.bf16.msra.mxu0 %v507
        %530 = vmatprep.subr.bf16.mxu0 0
        %531 = vmatpush1.bf16.msra.mxu0 %v524
        %532 = vmatprep.subr.bf16.mxu0 0
        %533 = vmatpush1.bf16.msra.mxu0 0
        %534 = vmatprep.subr.bf16.mxu0 0
        %535 = vmatpush1.bf16.msra.mxu0 0
        %536 = vmatprep.subr.bf16.mxu0 0
        %537 = vmatpush1.bf16.msra.mxu0 0
        %538 = vmatprep.subr.bf16.mxu0 0
        %539 = vmatpush1.bf16.msra.mxu0 0
        %540 = vmatprep.subr.bf16.mxu0 0
        %541 = vmatpush1.bf16.msra.mxu0 0
        %542 = vmatprep.subr.bf16.mxu0 0
        %543 = vmatpush1.bf16.msra.mxu0 0
        %544 = vmatprep.subr.bf16.mxu0 0
        %545 = vmatpush1.bf16.msra.mxu0 0
        %546 = vmatprep.subr.bf16.mxu0 0
        %547 = vmatpush1.bf16.msra.mxu0 0
        %548 = vmatprep.subr.bf16.mxu0 0
        %549 = vmatpush1.bf16.msra.mxu0 0
        %550 = vmatprep.subr.bf16.mxu0 0
        %551 = vmatpush1.bf16.msra.mxu0 0
        %552 = vmatprep.subr.bf16.mxu0 0
        %553 = vmatpush1.bf16.msra.mxu0 0
        %554 = vmatprep.subr.bf16.mxu0 0
        %555 = vmatpush1.bf16.msra.mxu0 0
        %556 = vmatprep.subr.bf16.mxu0 0
        %557 = vmatpush1.bf16.msra.mxu0 0
        %558 = vmatprep.mubr.bf16.mxu0 0
        %559 = vmatmul.mubr.bf16.gmra.mrb[0].mxu0 %v512
        %v560 = vpop.f32.mrb[0].mxu0
        %v561 = vadd.f32 0.0, %v560
        %v562 = vpop.f32.mrb[0].mxu0
        %v563 = vpop.f32.mrb[0].mxu0
        %v564 = vadd.f32 0.0, %v563
        %v565 = vpop.f32.mrb[0].mxu0
        %566 = vmatprep.mubr.bf16.mxu0 0
        %567 = vmatmul.mubr.bf16.gmra.mrb[0].mxu0 %v515
        %v568 = vpop.f32.mrb[0].mxu0
        %v569 = vadd.f32 0.0, %v568
        %v570 = vpop.f32.mrb[0].mxu0
        %v571 = vpop.f32.mrb[0].mxu0
        %v572 = vadd.f32 0.0, %v571
        %v573 = vpop.f32.mrb[0].mxu0
        %574 = vmatprep.mubr.bf16.mxu0 0
        %575 = vmatmul.mubr.bf16.gmra.mrb[0].mxu0 %v518
        %v576 = vpop.f32.mrb[0].mxu0
        %v577 = vadd.f32 0.0, %v576
        %v578 = vpop.f32.mrb[0].mxu0
        %v579 = vpop.f32.mrb[0].mxu0
        %v580 = vadd.f32 0.0, %v579
        %v581 = vpop.f32.mrb[0].mxu0
        %582 = vmatprep.mubr.bf16.mxu0 0
        %583 = vmatmul.mubr.bf16.gmra.mrb[0].mxu0 %v521
        %v584 = vpop.f32.mrb[0].mxu0
        %v585 = vadd.f32 0.0, %v584
        %v586 = vpop.f32.mrb[0].mxu0
        %v587 = vpop.f32.mrb[0].mxu0
        %v588 = vadd.f32 0.0, %v587
        %v589 = vpop.f32.mrb[0].mxu0
        %590 = vdwg.mxu0
        %v591 = vld [vmem:[#allocation2] sm:$0xff]
        %v592 = vld [vmem:[#allocation2 + $0x8] sm:$0xff]
        %v593 = vld [vmem:[#allocation2 + $0x10] sm:$0xff]
        %v594 = vld [vmem:[#allocation2 + $0x18] sm:$0xff]
        %v595 = vld [vmem:[#allocation2 + $0x20] sm:$0xff]
        %v596 = vld [vmem:[#allocation2 + $0x28] sm:$0xff]
        %v597 = vld [vmem:[#allocation2 + $0x30] sm:$0xff]
        %v598 = vld [vmem:[#allocation2 + $0x38] sm:$0xff]
        %v599 = vadd.f32 %v591, %v561
        %v600 = vadd.f32 %v592, %v564
        %v601 = vadd.f32 %v593, %v569
        %v602 = vadd.f32 %v594, %v572
        %v603 = vadd.f32 %v595, %v577
        %v604 = vadd.f32 %v596, %v580
        %v605 = vadd.f32 %v597, %v585
        %v606 = vadd.f32 %v598, %v588
        %607 = vst [vmem:[#allocation2] sm:$0xff] %v599
        %608 = vst [vmem:[#allocation2 + $0x8] sm:$0xff] %v600
        %609 = vst [vmem:[#allocation2 + $0x10] sm:$0xff] %v601
        %610 = vst [vmem:[#allocation2 + $0x18] sm:$0xff] %v602
        %611 = vst [vmem:[#allocation2 + $0x20] sm:$0xff] %v603
        %612 = vst [vmem:[#allocation2 + $0x28] sm:$0xff] %v604
        %613 = vst [vmem:[#allocation2 + $0x30] sm:$0xff] %v605
        %614 = vst [vmem:[#allocation2 + $0x38] sm:$0xff] %v606
        %v615 = vld [vmem:[#allocation2] sm:$0xff]
        %v616 = vld [vmem:[#allocation2 + $0x8] sm:$0xff]
        %v617 = vld [vmem:[#allocation2 + $0x10] sm:$0xff]
        %v618 = vld [vmem:[#allocation2 + $0x18] sm:$0xff]
        %v619 = vld [vmem:[#allocation2 + $0x20] sm:$0xff]
        %v620 = vld [vmem:[#allocation2 + $0x28] sm:$0xff]
        %v621 = vld [vmem:[#allocation2 + $0x30] sm:$0xff]
        %v622 = vld [vmem:[#allocation2 + $0x38] sm:$0xff]
        %v623 = vld [vmem:[%s2] sm:$0x1]
        %v625 = vlaneseq
        %v626 = vshrl.u32 %v625, 7
        %v627 = vsub.s32 0, %v626
        %v628 = vrot.slane %v623, %v627
        %v630 = vadd.f32 %v615, %v628
        %v631 = vadd.f32 %v616, %v628
        %v632 = vadd.f32 %v617, %v628
        %v633 = vadd.f32 %v618, %v628
        %v634 = vadd.f32 %v619, %v628
        %v635 = vadd.f32 %v620, %v628
        %v636 = vadd.f32 %v621, %v628
        %v637 = vadd.f32 %v622, %v628
        %vm638 = vcmp.ge.f32.partialorder %v630, 0.0
        %vm639 = vcmp.ge.f32.partialorder %v631, 0.0
        %vm640 = vcmp.ge.f32.partialorder %v632, 0.0
        %vm641 = vcmp.ge.f32.partialorder %v633, 0.0
        %vm642 = vcmp.ge.f32.partialorder %v634, 0.0
        %vm643 = vcmp.ge.f32.partialorder %v635, 0.0
        %vm644 = vcmp.ge.f32.partialorder %v636, 0.0
        %vm645 = vcmp.ge.f32.partialorder %v637, 0.0
        %v646 = vmul.f32 %v630, 0.01
        %v647 = vmul.f32 %v631, 0.01
        %v648 = vmul.f32 %v632, 0.01
        %v649 = vmul.f32 %v633, 0.01
        %v650 = vmul.f32 %v634, 0.01
        %v651 = vmul.f32 %v635, 0.01
        %v652 = vmul.f32 %v636, 0.01
        %v653 = vmul.f32 %v637, 0.01
        %v654 = vsel %vm638, %v630, %v646
        %v655 = vsel %vm639, %v631, %v647
        %v656 = vsel %vm640, %v632, %v648
        %v657 = vsel %vm641, %v633, %v649
        %v658 = vsel %vm642, %v634, %v650
        %v659 = vsel %vm643, %v635, %v651
        %v660 = vsel %vm644, %v636, %v652
        %v661 = vsel %vm645, %v637, %v653
        %662 = vst [vmem:[%s163] sm:$0xff] %v654
        %663 = vst [vmem:[%s163 + $0x8] sm:$0xff] %v655
        %664 = vst [vmem:[%s163 + $0x10] sm:$0xff] %v656
        %665 = vst [vmem:[%s163 + $0x18] sm:$0xff] %v657
        %666 = vst [vmem:[%s163 + $0x20] sm:$0xff] %v658
        %667 = vst [vmem:[%s163 + $0x28] sm:$0xff] %v659
        %668 = vst [vmem:[%s163 + $0x30] sm:$0xff] %v660
        %669 = vst [vmem:[%s163 + $0x38] sm:$0xff] %v661
        %s670 = sand.u32 %s93, 1
        %s671 = scalar_lea.sflag [#allocation4], %s670
        %s672 = sand.u32 %s93, 1
        %s673 = smul.addr %s672, 64
        %s674 = scalar_lea.vmem [#allocation3], %s673
        // Predicated region
        $region33: #{conv_layer_3d_down.1} parent=31 // pred_check
          %p675 = pneg %p103
        $region34: #{conv_layer_3d_down.1} parent=31 // pred_check_branch
          %677 = sbr.rel (%p675) target = $region36
        $region35: #{conv_layer_3d_down.1} parent=31 // pred_region
          %s679 = ssub.s32 1024, 1024
          %680 = vsyncadd %s671, %s679
          %s681 = smul.addr %s17, 8
          %s682 = smul.addr %s681, 128
          %s683 = scalar_lea.hbm %s3, %s682
          %s684 = sshll.u32 %s674, 4
          %s685 = int_to_ptr.vmem [resolvable:$true] %s684
          %690 = dma.vmem_to_hbm [thread:$0]  %s685, 1024, %s683, %s671, 128, 128, 8
        $region36: #{conv_layer_3d_down.1} parent=31 // pred_fallthru
          _
      $region32: #{conv_layer_3d_down.1} parent=5 // pred_fallthru
        _
      %p691 = scmp.le.s32.totalorder 2, %s12
      // Predicated region
      $region37: #{conv_layer_3d_down.1} parent=5 // pred_check
        %p692 = pneg %p691
      $region38: #{conv_layer_3d_down.1} parent=5 // pred_check_branch
        %694 = sbr.rel (%p692) target = $region40
      $region39: #{conv_layer_3d_down.1} parent=5 // pred_region
        %s695 = ssub.s32 %s12, 2
        // Predicated region
        $region41: #{conv_layer_3d_down.1} parent=39 // pred_check
          %p696 = pneg %p109
        $region42: #{conv_layer_3d_down.1} parent=39 // pred_check_branch
          %698 = sbr.rel (%p696) target = $region44
        $region43: #{conv_layer_3d_down.1} parent=39 // pred_region
          %s699 = sand.u32 %s94, 1
          %s700 = scalar_lea.sflag [#allocation4], %s699
          %s701 = sand.u32 %s94, 1
          %s702 = smul.addr %s701, 64
          %s703 = scalar_lea.vmem [#allocation3], %s702
          %704 = dma.done %s700, 1024
        $region44: #{conv_layer_3d_down.1} parent=39 // pred_fallthru
          _
      $region40: #{conv_layer_3d_down.1} parent=5 // pred_fallthru
        _
    $region6: #{conv_layer_3d_down.1} parent=1 // loop_footer
      %s16 = sadd.s32 1, %s12
    $region7: #{conv_layer_3d_down.1} parent=1 // loop_footer_branch
      %11 = sbr.rel target = $region3
    $region8: #{conv_layer_3d_down.1} parent=1 // loop_exit
      _
    %705 = vsyncpa [#allocation4], 1
    %s706 = scalar_lea.sflag [#allocation4], 1
    %707 = vsyncpa %s706, 1

</llo_original>
